<compile_context>
chip_gen: v7x
topology: tpu7x:2x2x1
jax: 0.10.0
libtpu: 0.0.40
codegen_flags: <defaults>
</compile_context>

<pallas_src>
import functools
import math

import jax
import jax.numpy as jnp
import numpy as np
from jax.experimental import pallas as pl
from jax.experimental.pallas import tpu as pltpu


def _default_vmem_limit():
    """Generation-aware scoped-VMEM budget (half of physical, capped at 64 MiB)."""
    try:
        cap = getattr(pltpu.get_tpu_info(), "vmem_capacity_bytes", None)
    except Exception:
        cap = None
    if not cap:
        return 32 * 1024 * 1024          # conservative: safe on v5e/v6e/v7x
    return int(min(cap // 2, 64 * 1024 * 1024))


VMEM_LIMIT = _default_vmem_limit()


def _tile(dim, target, grain):
    """Largest tile <= target that divides dim and is a multiple of grain.
    Falls back to the full dim (full-extent blocks are always legal)."""
    if dim <= target:
        return dim
    t = (target // grain) * grain
    while t >= grain:
        if dim % t == 0:
            return t
        t -= grain
    return dim


def _lane_tile(dim, target):
    """Lane-dim tile; prefer 256-aligned (v6e/v7x MXU), fall back to 128."""
    if dim % 256 == 0:
        t = _tile(dim, target, 256)
        if t <= target:
            return t
    return _tile(dim, target, 128)


def _parallel_tile(dim, target, grain=16):
    """Sublane tile for a 'parallel' grid axis; when possible cap it so the
    axis gets >= 2 grid steps (keeps both v7x TensorCores busy).  grain=16 is
    bf16-safe (and a multiple of the f32 sublane grain 8)."""
    if dim >= 2 * grain:
        target = max(min(target, (dim // 2 // grain) * grain), grain)
    return _tile(dim, target, grain)


# ---------------------------------------------------------------------------
# Tiled linear kernel: y = (x [+ pos]) @ w_t [+ b] [* out_scale], opt. ReLU
# ---------------------------------------------------------------------------

def _linear_kernel(*refs, relu, has_pos, has_bias, out_scale, single_k):
    it = iter(refs)
    x_ref = next(it)
    pos_ref = next(it) if has_pos else None
    w_ref = next(it)                      # (tk, tn) bf16 — already (K, N)
    b_ref = next(it) if has_bias else None
    o_ref = next(it)
    acc_ref = None if single_k else next(it)

    x = x_ref[...].astype(jnp.float32)
    if has_pos:
        x = x + pos_ref[...].astype(jnp.float32)   # fused positional add
    part = jnp.dot(x.astype(jnp.bfloat16), w_ref[...].astype(jnp.bfloat16),
                   preferred_element_type=jnp.float32)

    def finalize(y):
        if has_bias:
            y = y + b_ref[...].astype(jnp.float32)
        if out_scale is not None:
            y = y * out_scale
        if relu:
            y = jnp.maximum(y, 0.0)
        o_ref[...] = y.astype(o_ref.dtype)

    if single_k:
        finalize(part)                     # no accumulator round-trip
    else:
        k = pl.program_id(2)

        @pl.when(k == 0)
        def _():
            acc_ref[...] = jnp.zeros_like(acc_ref)

        acc_ref[...] += part

        @pl.when(k == pl.num_programs(2) - 1)
        def _():
            finalize(acc_ref[...])


def pallas_linear(x, w_t, b=None, pos=None, relu=False, out_scale=None,
                  out_dtype=None, tm=256, tn=512, tk=512):
    """x: (M, K), w_t: (K, N) bf16, b: (N,) or None, pos: (M, K) or None."""
    M, K = x.shape
    N = w_t.shape[1]
    if out_dtype is None:
        out_dtype = x.dtype
    tm = _parallel_tile(M, tm)
    tn = _lane_tile(N, tn)
    tk = _lane_tile(K, tk)
    nm, nn, nk = M // tm, N // tn, K // tk
    single_k = nk == 1

    if single_k:
        grid = (nm, nn)
        xmap = lambda i, j: (i, 0)
        wmap = lambda i, j: (0, j)
        bmap = lambda i, j: (0, j)
        omap = lambda i, j: (i, j)
        sems = ("parallel", "parallel")
        scratch = []
    else:
        grid = (nm, nn, nk)
        xmap = lambda i, j, k: (i, k)
        wmap = lambda i, j, k: (k, j)
        bmap = lambda i, j, k: (0, j)
        omap = lambda i, j, k: (i, j)
        sems = ("parallel", "parallel", "arbitrary")
        scratch = [pltpu.VMEM((tm, tn), jnp.float32)]

    in_specs = [pl.BlockSpec((tm, tk), xmap)]
    args = [x]
    if pos is not None:
        in_specs.append(pl.BlockSpec((tm, tk), xmap))
        args.append(pos)
    in_specs.append(pl.BlockSpec((tk, tn), wmap))
    args.append(w_t)
    if b is not None:
        in_specs.append(pl.BlockSpec((1, tn), bmap))
        args.append(b.reshape(1, N))

    return pl.pallas_call(
        functools.partial(_linear_kernel, relu=relu, has_pos=pos is not None,
                          has_bias=b is not None, out_scale=out_scale,
                          single_k=single_k),
        out_shape=jax.ShapeDtypeStruct((M, N), out_dtype),
        grid=grid,
        in_specs=in_specs,
        out_specs=pl.BlockSpec((tm, tn), omap),
        scratch_shapes=scratch,
        compiler_params=pltpu.CompilerParams(
            dimension_semantics=sems, vmem_limit_bytes=VMEM_LIMIT),
    )(*args)


# ---------------------------------------------------------------------------
# Fused K/V projection: memory is streamed from HBM once, two matmuls
# ---------------------------------------------------------------------------

def _kv_proj_kernel(*refs, has_pos, single_k):
    it = iter(refs)
    x_ref = next(it)
    pos_ref = next(it) if has_pos else None
    wk_ref = next(it)
    wv_ref = next(it)
    k_out = next(it)
    v_out = next(it)
    if not single_k:
        acck = next(it)
        accv = next(it)

    x = x_ref[...].astype(jnp.float32)
    xv = x.astype(jnp.bfloat16)
    if has_pos:
        xk = (x + pos_ref[...].astype(jnp.float32)).astype(jnp.bfloat16)
    else:
        xk = xv
    pk = jnp.dot(xk, wk_ref[...].astype(jnp.bfloat16),
                 preferred_element_type=jnp.float32)
    pv = jnp.dot(xv, wv_ref[...].astype(jnp.bfloat16),
                 preferred_element_type=jnp.float32)

    if single_k:
        k_out[...] = pk.astype(k_out.dtype)
        v_out[...] = pv.astype(v_out.dtype)
    else:
        kk = pl.program_id(2)

        @pl.when(kk == 0)
        def _():
            acck[...] = jnp.zeros_like(acck)
            accv[...] = jnp.zeros_like(accv)

        acck[...] += pk
        accv[...] += pv

        @pl.when(kk == pl.num_programs(2) - 1)
        def _():
            k_out[...] = acck[...].astype(k_out.dtype)
            v_out[...] = accv[...].astype(v_out.dtype)


def pallas_kv_proj(x, wk_t, wv_t, pos=None, tm=256, tn=512, tk=512):
    """x: (M, K); wk_t/wv_t: (K, N) bf16 -> (k, v) each (M, N) bf16."""
    M, K = x.shape
    N = wk_t.shape[1]
    tm = _parallel_tile(M, tm)
    tn = _lane_tile(N, tn)
    tk = _lane_tile(K, tk)
    nm, nn, nk = M // tm, N // tn, K // tk
    single_k = nk == 1
    has_pos = pos is not None

    if single_k:
        grid = (nm, nn)
        xmap = lambda i, j: (i, 0)
        wmap = lambda i, j: (0, j)
        omap = lambda i, j: (i, j)
        sems = ("parallel", "parallel")
        scratch = []
    else:
        grid = (nm, nn, nk)
        xmap = lambda i, j, k: (i, k)
        wmap = lambda i, j, k: (k, j)
        omap = lambda i, j, k: (i, j)
        sems = ("parallel", "parallel", "arbitrary")
        scratch = [pltpu.VMEM((tm, tn), jnp.float32),
                   pltpu.VMEM((tm, tn), jnp.float32)]

    in_specs = [pl.BlockSpec((tm, tk), xmap)]
    args = [x]
    if has_pos:
        in_specs.append(pl.BlockSpec((tm, tk), xmap))
        args.append(pos)
    in_specs += [pl.BlockSpec((tk, tn), wmap), pl.BlockSpec((tk, tn), wmap)]
    args += [wk_t, wv_t]

    return pl.pallas_call(
        functools.partial(_kv_proj_kernel, has_pos=has_pos, single_k=single_k),
        out_shape=(jax.ShapeDtypeStruct((M, N), jnp.bfloat16),
                   jax.ShapeDtypeStruct((M, N), jnp.bfloat16)),
        grid=grid,
        in_specs=in_specs,
        out_specs=(pl.BlockSpec((tm, tn), omap), pl.BlockSpec((tm, tn), omap)),
        scratch_shapes=scratch,
        compiler_params=pltpu.CompilerParams(
            dimension_semantics=sems, vmem_limit_bytes=VMEM_LIMIT),
    )(*args)


# ---------------------------------------------------------------------------
# Fused epilogue kernel: LayerNorm(res + x @ w_t + b)
# ---------------------------------------------------------------------------

def _linear_res_ln_kernel(*refs, eps, single_k):
    it = iter(refs)
    x_ref, w_ref, b_ref, res_ref, g_ref, be_ref, o_ref = (next(it) for _ in range(7))
    acc_ref = None if single_k else next(it)

    part = jnp.dot(x_ref[...].astype(jnp.bfloat16),
                   w_ref[...].astype(jnp.bfloat16),
                   preferred_element_type=jnp.float32)

    def finalize(acc):
        # LN math kept in f32 (v5e VPU has no bf16 path)
        z = acc + b_ref[...].astype(jnp.float32) + res_ref[...].astype(jnp.float32)
        mu = jnp.mean(z, axis=-1, keepdims=True)
        var = jnp.mean((z - mu) ** 2, axis=-1, keepdims=True)
        y = (z - mu) * jax.lax.rsqrt(var + eps) * g_ref[...] + be_ref[...]
        o_ref[...] = y.astype(o_ref.dtype)

    if single_k:
        finalize(part)
    else:
        k = pl.program_id(1)

        @pl.when(k == 0)
        def _():
            acc_ref[...] = jnp.zeros_like(acc_ref)

        acc_ref[...] += part

        @pl.when(k == pl.num_programs(1) - 1)
        def _():
            finalize(acc_ref[...])


def pallas_linear_residual_layernorm(x, w_t, b, res, gamma, beta,
                                     eps=1e-5, tm=256, tk=512):
    """LayerNorm(res + x @ w_t + b).  x: (M, K), w_t: (K, D), res: (M, D)."""
    M, K = x.shape
    D = w_t.shape[1]
    tm = _parallel_tile(M, tm)
    tk = _lane_tile(K, tk)
    nk = K // tk
    single_k = nk == 1

    if single_k:
        grid = (M // tm,)
        xmap = lambda i: (i, 0)
        wmap = lambda i: (0, 0)
        vmap_ = lambda i: (0, 0)
        rmap = lambda i: (i, 0)
        omap = lambda i: (i, 0)
        sems = ("parallel",)
        scratch = []
    else:
        grid = (M // tm, nk)
        xmap = lambda i, k: (i, k)
        wmap = lambda i, k: (k, 0)
        vmap_ = lambda i, k: (0, 0)
        rmap = lambda i, k: (i, 0)
        omap = lambda i, k: (i, 0)
        sems = ("parallel", "arbitrary")
        scratch = [pltpu.VMEM((tm, D), jnp.float32)]

    return pl.pallas_call(
        functools.partial(_linear_res_ln_kernel, eps=eps, single_k=single_k),
        out_shape=jax.ShapeDtypeStruct((M, D), res.dtype),
        grid=grid,
        in_specs=[
            pl.BlockSpec((tm, tk), xmap),
            pl.BlockSpec((tk, D), wmap),
            pl.BlockSpec((1, D), vmap_),
            pl.BlockSpec((tm, D), rmap),
            pl.BlockSpec((1, D), vmap_),
            pl.BlockSpec((1, D), vmap_),
        ],
        out_specs=pl.BlockSpec((tm, D), omap),
        scratch_shapes=scratch,
        compiler_params=pltpu.CompilerParams(
            dimension_semantics=sems, vmem_limit_bytes=VMEM_LIMIT),
    )(x, w_t, b.reshape(1, D), res, gamma.reshape(1, D), beta.reshape(1, D))


# ---------------------------------------------------------------------------
# Multi-head attention: one batch per grid step, per-head results stored
# directly into their lane range of o_ref (no concat temporary)
# ---------------------------------------------------------------------------

def _attn_kernel(q_ref, k_ref, v_ref, o_ref, *, nhead):
    d = q_ref.shape[2]
    hd = d // nhead
    q = q_ref[0]                 # (Lq,  d) bf16 — scale already folded into q
    k = k_ref[0]                 # (Lkv, d) bf16
    v = v_ref[0]                 # (Lkv, d) bf16
    for h in range(nhead):       # static unroll over heads
        lo = h * hd
        qh = q[:, lo:lo + hd]
        kh = k[:, lo:lo + hd]
        vh = v[:, lo:lo + hd]
        # contract over head_dim without materializing k^T; f32 scores
        s = jax.lax.dot_general(qh, kh, (((1,), (1,)), ((), ())),
                                preferred_element_type=jnp.float32)
        m = jnp.max(s, axis=-1, keepdims=True)
        p = jnp.exp(s - m)
        p = p * pl.reciprocal(jnp.sum(p, axis=-1, keepdims=True), approx=True)
        oh = jnp.dot(p.astype(jnp.bfloat16), vh,
                     preferred_element_type=jnp.float32)
        o_ref[0, :, lo:lo + hd] = oh.astype(o_ref.dtype)


def pallas_attention(q, k, v, nhead):
    """q: (B, Lq, d) bf16, k/v: (B, Lkv, d) bf16 -> (B, Lq, d) bf16."""
    B, Lq, d = q.shape
    Lkv = k.shape[1]
    # TODO(synk): add flash-style Lkv tiling (online-softmax m/l/acc scratch on
    # an 'arbitrary' grid axis) so K/V/score residency stays bounded inside
    # v7x's 64 MiB VMEM for long memory sequences.
    return pl.pallas_call(
        functools.partial(_attn_kernel, nhead=nhead),
        out_shape=jax.ShapeDtypeStruct((B, Lq, d), q.dtype),
        grid=(B,),
        in_specs=[
            pl.BlockSpec((1, Lq, d), lambda b: (b, 0, 0)),
            pl.BlockSpec((1, Lkv, d), lambda b: (b, 0, 0)),
            pl.BlockSpec((1, Lkv, d), lambda b: (b, 0, 0)),
        ],
        out_specs=pl.BlockSpec((1, Lq, d), lambda b: (b, 0, 0)),
        compiler_params=pltpu.CompilerParams(
            dimension_semantics=("parallel",),
            vmem_limit_bytes=VMEM_LIMIT),
    )(q, k, v)


# ---------------------------------------------------------------------------
# Parameter init (deterministic, synthetic); weights pre-transposed to (K, N)
# and stored bf16 so the MXU gets bf16 operands with half the DMA bytes.
# ---------------------------------------------------------------------------

def xavier_uniform(key, shape):
    fan_out, fan_in = shape
    lim = math.sqrt(6.0 / (fan_in + fan_out))
    return jax.random.uniform(key, shape, jnp.float32, -lim, lim)


def init_params(key, d_model, nhead, dim_feedforward):
    ks = jax.random.split(key, 8)
    wq = xavier_uniform(ks[0], (d_model, d_model))
    wk = xavier_uniform(ks[1], (d_model, d_model))
    wv = xavier_uniform(ks[2], (d_model, d_model))
    wo = xavier_uniform(ks[3], (d_model, d_model))
    w1 = xavier_uniform(ks[4], (dim_feedforward, d_model))
    w2 = xavier_uniform(ks[6], (d_model, dim_feedforward))
    bf16 = jnp.bfloat16
    return dict(
        nhead=nhead,
        wq_t=wq.T.astype(bf16), wk_t=wk.T.astype(bf16),
        wv_t=wv.T.astype(bf16), wo_t=wo.T.astype(bf16),
        bo=jnp.zeros((d_model,), jnp.float32),
        w1_t=w1.T.astype(bf16),
        b1=jax.random.uniform(ks[5], (dim_feedforward,), jnp.float32, -0.01, 0.01),
        w2_t=w2.T.astype(bf16),
        b2=jax.random.uniform(ks[7], (d_model,), jnp.float32, -0.01, 0.01),
        g1=jnp.ones((d_model,), jnp.float32),
        be1=jnp.zeros((d_model,), jnp.float32),
        g2=jnp.ones((d_model,), jnp.float32),
        be2=jnp.zeros((d_model,), jnp.float32),
    )


# ---------------------------------------------------------------------------
# DecoderCFALayer forward (forward_post semantics, eval mode)
# ---------------------------------------------------------------------------

def decoder_cfa_layer(params, tgt, memory, pos_enc=None, pos_dec=None):
    Lq, B, d = tgt.shape
    Lkv = memory.shape[0]
    nhead = params["nhead"]
    hd = d // nhead

    # go batch-first once at the boundary; intermediates stay (B*L, d) so no
    # activation transposes are needed between kernels.
    tgt_bf = jnp.transpose(tgt, (1, 0, 2)).reshape(B * Lq, d)
    mem_bf = jnp.transpose(memory, (1, 0, 2)).reshape(B * Lkv, d)
    posd_bf = (None if pos_dec is None
               else jnp.transpose(pos_dec, (1, 0, 2)).reshape(B * Lq, d))
    pose_bf = (None if pos_enc is None
               else jnp.transpose(pos_enc, (1, 0, 2)).reshape(B * Lkv, d))

    # TODO(synk): the reference scales scores by 1/sqrt(jt.var(d_k)), which is
    # degenerate (variance of a scalar); we use standard 1/sqrt(d_k), folded
    # into the Q-projection epilogue so attention does no extra VPU multiply.
    q = pallas_linear(tgt_bf, params["wq_t"], pos=posd_bf,
                      out_scale=1.0 / math.sqrt(hd), out_dtype=jnp.bfloat16)
    # fused K/V projection: `memory` read from HBM once, pos_enc on K only
    k, v = pallas_kv_proj(mem_bf, params["wk_t"], params["wv_t"], pos=pose_bf)

    # TODO(synk): memory_mask / memory_key_padding_mask are not supported.
    attn = pallas_attention(q.reshape(B, Lq, d), k.reshape(B, Lkv, d),
                            v.reshape(B, Lkv, d), nhead)

    # fused: out-projection + residual + LayerNorm1   (dropout = identity)
    t = pallas_linear_residual_layernorm(
        attn.reshape(B * Lq, d), params["wo_t"], params["bo"],
        tgt_bf, params["g1"], params["be1"])

    # FFN: linear1 + ReLU (bf16 hidden), then fused linear2 + residual + LN2
    h = pallas_linear(t, params["w1_t"], b=params["b1"], relu=True,
                      out_dtype=jnp.bfloat16)
    out = pallas_linear_residual_layernorm(
        h, params["w2_t"], params["b2"], t, params["g2"], params["be2"])

    return jnp.transpose(out.reshape(B, Lq, d), (1, 0, 2))


# Pure-JAX reference (emulates bf16 MXU operands with f32 accumulation)
def decoder_cfa_layer_ref(params, tgt, memory, pos_enc, pos_dec):
    Lq, B, d = tgt.shape
    Lkv = memory.shape[0]
    nhead = params["nhead"]
    hd = d // nhead
    scale = 1.0 / math.sqrt(hd)

    def mm(a, w):
        return jnp.dot(a.astype(jnp.bfloat16), w.astype(jnp.bfloat16),
                       preferred_element_type=jnp.float32)

    q = mm((tgt + pos_dec).reshape(Lq * B, d), params["wq_t"]) * scale
    k = mm((memory + pos_enc).reshape(Lkv * B, d), params["wk_t"])
    v = mm(memory.reshape(Lkv * B, d), params["wv_t"])
    q = q.reshape(Lq, B * nhead, hd).transpose(1, 0, 2)
    k = k.reshape(Lkv, B * nhead, hd).transpose(1, 0, 2)
    v = v.reshape(Lkv, B * nhead, hd).transpose(1, 0, 2)
    s = jnp.einsum("bqd,bkd->bqk", q.astype(jnp.bfloat16),
                   k.astype(jnp.bfloat16), preferred_element_type=jnp.float32)
    p = jax.nn.softmax(s, axis=-1)
    a = jnp.einsum("bqk,bkd->bqd", p.astype(jnp.bfloat16),
                   v.astype(jnp.bfloat16), preferred_element_type=jnp.float32)
    a = a.transpose(1, 0, 2).reshape(Lq * B, d)
    a = mm(a, params["wo_t"]) + params["bo"]

    def ln(z, g, b, eps=1e-5):
        mu = jnp.mean(z, -1, keepdims=True)
        var = jnp.mean((z - mu) ** 2, -1, keepdims=True)
        return (z - mu) * jax.lax.rsqrt(var + eps) * g + b

    t = ln(tgt.reshape(Lq * B, d) + a, params["g1"], params["be1"])
    ff = mm(jnp.maximum(mm(t, params["w1_t"]) + params["b1"], 0.0),
            params["w2_t"]) + params["b2"]
    out = ln(t + ff, params["g2"], params["be2"])
    return out.reshape(Lq, B, d)


if __name__ == "__main__":
    d_model, nhead, dim_feedforward = 32, 4, 64
    Lq, Lkv, B = 8, 16, 2

    key = jax.random.PRNGKey(0)
    kp, kt, km, kpe, kpd = jax.random.split(key, 5)
    params = init_params(kp, d_model, nhead, dim_feedforward)

    tgt = jax.random.normal(kt, (Lq, B, d_model), jnp.float32)
    memory = jax.random.normal(km, (Lkv, B, d_model), jnp.float32)
    pos_enc = jax.random.normal(kpe, (Lkv, B, d_model), jnp.float32)
    pos_dec = jax.random.normal(kpd, (Lq, B, d_model), jnp.float32)

    out = decoder_cfa_layer(params, tgt, memory, pos_enc, pos_dec)
    out = jax.block_until_ready(out)

    ref = decoder_cfa_layer_ref(params, tgt, memory, pos_enc, pos_dec)
    assert out.shape == (Lq, B, d_model)
    assert out.dtype == jnp.float32
    # bf16 operands + approx-reciprocal softmax + tiled-K reassociation
    assert np.allclose(np.asarray(out), np.asarray(ref), atol=1e-2, rtol=1e-2)
    print("KERNEL_OK")
</pallas_src>

<mosaic_0001>
module attributes {stable_mosaic.version = 11 : i64} {
  func.func @_linear_kernel(%arg0: i32, %arg1: i32, %arg2: memref<16x32xf32, #tpu.memory_space<vmem>>, %arg3: memref<16x32xf32, #tpu.memory_space<vmem>>, %arg4: memref<32x32xbf16, #tpu.memory_space<vmem>>, %arg5: memref<16x32xbf16, #tpu.memory_space<vmem>>) attributes {dimension_semantics = [#tpu.dimension_semantics<parallel>, #tpu.dimension_semantics<parallel>], iteration_bounds = array<i64: 1, 1>, scalar_prefetch = 0 : i64, scratch_operands = 0 : i64, tpu.core_type = #tpu.core_type<tc>, window_params = [{transform_indices = @transform_0, window_bounds = array<i64: 16, 32>}, {transform_indices = @transform_1, window_bounds = array<i64: 16, 32>}, {transform_indices = @transform_2, window_bounds = array<i64: 32, 32>}, {transform_indices = @transform_3, window_bounds = array<i64: 16, 32>}]} {
    %c0 = arith.constant 0 : index
    %c0_0 = arith.constant 0 : index
    %0 = vector.load %arg2[%c0, %c0_0] : memref<16x32xf32, #tpu.memory_space<vmem>>, vector<16x32xf32>
    %c0_1 = arith.constant 0 : index
    %c0_2 = arith.constant 0 : index
    %1 = vector.load %arg3[%c0_1, %c0_2] : memref<16x32xf32, #tpu.memory_space<vmem>>, vector<16x32xf32>
    %2 = arith.addf %0, %1 : vector<16x32xf32>
    %3 = arith.truncf %2 : vector<16x32xf32> to vector<16x32xbf16>
    %c0_3 = arith.constant 0 : index
    %c0_4 = arith.constant 0 : index
    %4 = vector.load %arg4[%c0_3, %c0_4] : memref<32x32xbf16, #tpu.memory_space<vmem>>, vector<32x32xbf16>
    %cst = arith.constant dense<0.000000e+00> : vector<16x32xf32>
    %5 = tpu.matmul %3, %4, %cst {dimension_numbers = #tpu.dot_dimension_numbers<[1], [0], [0], [1], [0, 0, 1, 1], [], []>} : vector<16x32xbf16>, vector<32x32xbf16>, vector<16x32xf32> -> vector<16x32xf32>
    %cst_5 = arith.constant 0.353553385 : f32
    %6 = vector.broadcast %cst_5 : f32 to vector<16x32xf32>
    %7 = arith.mulf %5, %6 : vector<16x32xf32>
    %8 = arith.truncf %7 : vector<16x32xf32> to vector<16x32xbf16>
    %c0_6 = arith.constant 0 : index
    %c0_7 = arith.constant 0 : index
    %9 = vector.load %arg5[%c0_6, %c0_7] : memref<16x32xbf16, #tpu.memory_space<vmem>>, vector<16x32xbf16>
    tpu.vector_store %arg5[%c0_6, %c0_7], %8 {strides = array<i32>} : memref<16x32xbf16, #tpu.memory_space<vmem>>, vector<16x32xbf16>,
    return
  }
  func.func @transform_0(%arg0: i32, %arg1: i32) -> (i32, i32) {
    %c0_i32 = arith.constant 0 : i32
    %c0_i32_0 = arith.constant 0 : i32
    return %arg0, %c0_i32 : i32, i32
  }
  func.func @transform_1(%arg0: i32, %arg1: i32) -> (i32, i32) {
    %c0_i32 = arith.constant 0 : i32
    %c0_i32_0 = arith.constant 0 : i32
    return %arg0, %c0_i32 : i32, i32
  }
  func.func @transform_2(%arg0: i32, %arg1: i32) -> (i32, i32) {
    %c0_i32 = arith.constant 0 : i32
    %c0_i32_0 = arith.constant 0 : i32
    return %c0_i32, %arg1 : i32, i32
  }
  func.func @transform_3(%arg0: i32, %arg1: i32) -> (i32, i32) {
    %c0_i32 = arith.constant 0 : i32
    return %arg0, %arg1 : i32, i32
  }
}

</mosaic_0001>

<llo_original>
// kernel: tpu_custom_call.1
$region0: #{tpu_custom_call.1}
  #allocation0 [shape = 'u32[]', space=smem, size = 0x4, offset = 0x4, fixed_abs, tag = 'smem constant byte address 0x4 - core index']
  #allocation1 [shape = 'u32[144,128]{1,0:T(1,128)}', space=vmem, size = 0x12000, scoped, tag = 'internal scratch']
  %s0 = inlined_call_operand.hbm [shape: f32[16,32], index: 0, kind: input, shape index: {}]
  %s1 = inlined_call_operand.hbm [shape: f32[16,32], index: 1, kind: input, shape index: {}]
  %s2 = inlined_call_operand.hbm [shape: bf16[32,32], index: 2, kind: input, shape index: {}]
  %s3 = inlined_call_operand.hbm [shape: bf16[16,32], index: 3, kind: output, shape index: {}]
  %s4 = sld [smem:[#allocation0]]
  $region34: #{tpu_custom_call.1} parent=0
    _
  %s6 = ssub.s32 1, %s4
  %s7 = scalar_select 0, %s6, %s4
  $region1: #{tpu_custom_call.1} parent=0
    #allocation2 [shape = 'u8[8192]{0}', space=vmem, size = 0x2000, scoped, tag = 'input window, operand 0, single buffered']
    #allocation3 [shape = 's32[1]{0}', space=sflag, size = 0x4, scoped, tag = 'scoped memory for tpu_custom_call.1']
    #allocation4 [shape = 's32[1]{0}', space=sflag, size = 0x4, scoped, tag = 'scoped memory for tpu_custom_call.1']
    #allocation5 [shape = 'u8[8192]{0}', space=vmem, size = 0x2000, scoped, tag = 'input window, operand 1, single buffered']
    #allocation6 [shape = 's32[1]{0}', space=sflag, size = 0x4, scoped, tag = 'scoped memory for tpu_custom_call.1']
    #allocation7 [shape = 'u8[8192]{0}', space=vmem, size = 0x2000, scoped, tag = 'input window, operand 2, single buffered']
    #allocation8 [shape = 'u8[4096]{0}', space=vmem, size = 0x1000, scoped, tag = 'output window, operand 0, single buffered']
    %8 = vsyncpa [#allocation3], 0
    %9 = vsyncpa [#allocation6], 0
    %10 = vsyncpa [#allocation4], 0
    // Predicated region
    $region2: #{tpu_custom_call.1} parent=1 // pred_check
      _
    $region3: #{tpu_custom_call.1} parent=1 // pred_check_branch
      %12 = sbr.rel (0) target = $region5
    $region4: #{tpu_custom_call.1} parent=1 // pred_region
      %s14 = ssub.s32 256, 256
      %15 = vsyncadd [#allocation3], %s14
      %s16 = sshll.u32 [#allocation2], 4
      %s17 = int_to_ptr.vmem [resolvable:$true] %s16
      %22 = dma.hbm_to_vmem [thread:$0]  %s0, 256, %s17, [#allocation3], 128, 128, 8
    $region5: #{tpu_custom_call.1} parent=1 // pred_fallthru
      _
    // Predicated region
    $region6: #{tpu_custom_call.1} parent=1 // pred_check
      _
    $region7: #{tpu_custom_call.1} parent=1 // pred_check_branch
      %24 = sbr.rel (0) target = $region9
    $region8: #{tpu_custom_call.1} parent=1 // pred_region
      %s26 = ssub.s32 256, 256
      %27 = vsyncadd [#allocation6], %s26
      %s28 = sshll.u32 [#allocation5], 4
      %s29 = int_to_ptr.vmem [resolvable:$true] %s28
      %34 = dma.hbm_to_vmem [thread:$0]  %s1, 256, %s29, [#allocation6], 128, 128, 8
    $region9: #{tpu_custom_call.1} parent=1 // pred_fallthru
      _
    // Predicated region
    $region10: #{tpu_custom_call.1} parent=1 // pred_check
      _
    $region11: #{tpu_custom_call.1} parent=1 // pred_check_branch
      %36 = sbr.rel (0) target = $region13
    $region12: #{tpu_custom_call.1} parent=1 // pred_region
      %s38 = ssub.s32 256, 256
      %39 = vsyncadd [#allocation6], %s38
      %s40 = sshll.u32 [#allocation7], 4
      %s41 = int_to_ptr.vmem [resolvable:$true] %s40
      %46 = dma.hbm_to_vmem [thread:$0]  %s2, 256, %s41, [#allocation6], 64, 64, 4
    $region13: #{tpu_custom_call.1} parent=1 // pred_fallthru
      _
    // Predicated region
    $region14: #{tpu_custom_call.1} parent=1 // pred_check
      _
    $region15: #{tpu_custom_call.1} parent=1 // pred_check_branch
      %48 = sbr.rel (0) target = $region17
    $region16: #{tpu_custom_call.1} parent=1 // pred_region
      %49 = dma.done [#allocation3], 256
    $region17: #{tpu_custom_call.1} parent=1 // pred_fallthru
      _
    // Predicated region
    $region18: #{tpu_custom_call.1} parent=1 // pred_check
      _
    $region19: #{tpu_custom_call.1} parent=1 // pred_check_branch
      %51 = sbr.rel (0) target = $region21
    $region20: #{tpu_custom_call.1} parent=1 // pred_region
      %52 = dma.done [#allocation6], 256
    $region21: #{tpu_custom_call.1} parent=1 // pred_fallthru
      _
    // Predicated region
    $region22: #{tpu_custom_call.1} parent=1 // pred_check
      _
    $region23: #{tpu_custom_call.1} parent=1 // pred_check_branch
      %54 = sbr.rel (0) target = $region25
    $region24: #{tpu_custom_call.1} parent=1 // pred_region
      %55 = dma.done [#allocation6], 256
    $region25: #{tpu_custom_call.1} parent=1 // pred_fallthru
      _
    %v57 = vld [vmem:[#allocation2] sm:$0xff]
    %v58 = vld [vmem:[#allocation2 + $0x8] sm:$0xff]
    %v59 = vld [vmem:[#allocation5] sm:$0xff]
    %v60 = vld [vmem:[#allocation5 + $0x8] sm:$0xff]
    %v61 = vadd.f32 %v57, %v59
    %v62 = vadd.f32 %v58, %v60
    %v63 = vpack.c.bf16 %v62, %v61
    %v64 = vld [vmem:[#allocation7] sm:$0xf]
    %v65 = vld [vmem:[#allocation7 + $0x4] sm:$0xf]
    %v66 = vld [vmem:[#allocation7 + $0x8] sm:$0xf]
    %v67 = vld [vmem:[#allocation7 + $0xc] sm:$0xf]
    %v72 = vunpack.c.l.b16 %v64
    %v73 = vunpack.c.l.b16 %v65
    %v74 = vunpack.c.l.b16 %v66
    %v75 = vunpack.c.l.b16 %v67
    %v76 = vpack.c.b16 %v73, %v72
    %v77 = vpack.c.b16 %v75, %v74
    %vm80 = vcmask 261120
    %v82 = vsel %vm80, %v63, 0
    %84 = vmatprep.subr.bf16.mxu0 0
    %85 = vmatpush1.bf16.msra.mxu0 %v76
    %86 = vmatprep.subr.bf16.mxu0 0
    %87 = vmatpush1.bf16.msra.mxu0 %v77
    %88 = vmatprep.subr.bf16.mxu0 0
    %89 = vmatpush1.bf16.msra.mxu0 0
    %90 = vmatprep.subr.bf16.mxu0 0
    %91 = vmatpush1.bf16.msra.mxu0 0
    %92 = vmatprep.subr.bf16.mxu0 0
    %93 = vmatpush1.bf16.msra.mxu0 0
    %94 = vmatprep.subr.bf16.mxu0 0
    %95 = vmatpush1.bf16.msra.mxu0 0
    %96 = vmatprep.subr.bf16.mxu0 0
    %97 = vmatpush1.bf16.msra.mxu0 0
    %98 = vmatprep.subr.bf16.mxu0 0
    %99 = vmatpush1.bf16.msra.mxu0 0
    %100 = vmatprep.subr.bf16.mxu0 0
    %101 = vmatpush1.bf16.msra.mxu0 0
    %102 = vmatprep.subr.bf16.mxu0 0
    %103 = vmatpush1.bf16.msra.mxu0 0
    %104 = vmatprep.subr.bf16.mxu0 0
    %105 = vmatpush1.bf16.msra.mxu0 0
    %106 = vmatprep.subr.bf16.mxu0 0
    %107 = vmatpush1.bf16.msra.mxu0 0
    %108 = vmatprep.subr.bf16.mxu0 0
    %109 = vmatpush1.bf16.msra.mxu0 0
    %110 = vmatprep.subr.bf16.mxu0 0
    %111 = vmatpush1.bf16.msra.mxu0 0
    %112 = vmatprep.subr.bf16.mxu0 0
    %113 = vmatpush1.bf16.msra.mxu0 0
    %114 = vmatprep.subr.bf16.mxu0 0
    %115 = vmatpush1.bf16.msra.mxu0 0
    %116 = vmatprep.mubr.bf16.mxu0 0
    %117 = vmatmul.mubr.bf16.gmra.mrb[0].mxu0 %v82
    %v118 = vpop.f32.mrb[0].mxu0
    %v119 = vadd.f32 0.0, %v118
    %v120 = vpop.f32.mrb[0].mxu0
    %v121 = vpop.f32.mrb[0].mxu0
    %v122 = vadd.f32 0.0, %v121
    %v123 = vpop.f32.mrb[0].mxu0
    %124 = vdwg.mxu0
    %v125 = vmul.f32 %v119, 0.35355338
    %v126 = vmul.f32 %v122, 0.35355338
    %v127 = vpack.c.bf16 %v126, %v125
    %v129 = vunpack.c.l.b16 %v127
    %v130 = vunpack.c.h.b16 %v127
    %v131 = vpack.c.b16 %v129, %v129
    %v132 = vpack.c.b16 %v130, %v130
    %vm135 = vcmask 257024
    %136 = vst.msk [vmem:[#allocation8] sm:$0xf] %vm135, %v131
    %137 = vst.msk [vmem:[#allocation8 + $0x4] sm:$0xf] %vm135, %v132
    // Predicated region
    $region26: #{tpu_custom_call.1} parent=1 // pred_check
      _
    $region27: #{tpu_custom_call.1} parent=1 // pred_check_branch
      %139 = sbr.rel (0) target = $region29
    $region28: #{tpu_custom_call.1} parent=1 // pred_region
      %s141 = ssub.s32 128, 128
      %142 = vsyncadd [#allocation4], %s141
      %s143 = sshll.u32 [#allocation8], 4
      %s144 = int_to_ptr.vmem [resolvable:$true] %s143
      %149 = dma.vmem_to_hbm [thread:$0]  %s144, 128, %s3, [#allocation4], 64, 64, 4
    $region29: #{tpu_custom_call.1} parent=1 // pred_fallthru
      _
    // Predicated region
    $region30: #{tpu_custom_call.1} parent=1 // pred_check
      _
    $region31: #{tpu_custom_call.1} parent=1 // pred_check_branch
      %151 = sbr.rel (0) target = $region33
    $region32: #{tpu_custom_call.1} parent=1 // pred_region
      %152 = dma.done [#allocation4], 128
    $region33: #{tpu_custom_call.1} parent=1 // pred_fallthru
      _
    %153 = vsyncpa [#allocation3], 1
    %154 = vsyncpa [#allocation6], 1
    %155 = vsyncpa [#allocation4], 1

</llo_original>
